<compile_context>
chip_gen: v7x
topology: tpu7x:2x2x1
jax: 0.10.0
libtpu: 0.0.40
codegen_flags: <defaults>
</compile_context>

<pallas_src>
import jax
import jax.numpy as jnp
from jax.experimental import pallas as pl
from jax.experimental.pallas import tpu as pltpu

_EPS = 1e-5
_VMEM_LIMIT = 48 * 1024 * 1024          # conservative: v7x has 64 MiB/TC (v5e/v6e: 128 MiB)
_VMEM_BLOCK_BUDGET = 24 * 1024 * 1024   # target for the double-buffered per-step blocks
_MAX_TMO = 4096


def _conv_stats_kernel(x1_ref, x2_ref, w1_ref, w2_ref, h_ref, sum_ref, sumsq_ref):
    """Pass A (fused): h = W @ relu(x) written to HBM + per-sample channel stats."""

    @pl.when(pl.program_id(1) == 0)
    def _init():
        sum_ref[...] = jnp.zeros_like(sum_ref)
        sumsq_ref[...] = jnp.zeros_like(sumsq_ref)

    r1 = jnp.maximum(x1_ref[0], 0.0)                                   # (C_in, tmo)  ReLU
    r2 = jnp.maximum(x2_ref[0], 0.0)
    h1 = jnp.dot(w1_ref[...], r1, preferred_element_type=jnp.float32)  # (C_half, tmo)
    h2 = jnp.dot(w2_ref[...], r2, preferred_element_type=jnp.float32)

    # Each conv branch writes its own full (C_half, tmo) slab: aligned, unmasked stores.
    h_ref[0, 0, :, :] = h1
    h_ref[0, 1, :, :] = h2

    # Per-sample partial statistics (accumulated across the spatial-tile axis only).
    sum_ref[0, 0, :, :] += jnp.sum(h1, axis=1, keepdims=True)
    sum_ref[0, 1, :, :] += jnp.sum(h2, axis=1, keepdims=True)
    sumsq_ref[0, 0, :, :] += jnp.sum(h1 * h1, axis=1, keepdims=True)
    sumsq_ref[0, 1, :, :] += jnp.sum(h2 * h2, axis=1, keepdims=True)


def _bn_kernel(h_ref, scale_ref, shift_ref, o_ref):
    """Pass B: per-channel affine (BN folded into scale/shift), applied in place."""
    o_ref[0, 0, :, :] = h_ref[0, 0, :, :] * scale_ref[0] + shift_ref[0]
    o_ref[0, 1, :, :] = h_ref[0, 1, :, :] * scale_ref[1] + shift_ref[1]


def _pick_tile(mo, c_in, c_half):
    """Lane-tile size scaled with channel count against the VMEM block budget."""
    floats_per_lane = 2 * c_in + 2 * c_half              # x1 + x2 + h blocks, per lane
    cap = _VMEM_BLOCK_BUDGET // (floats_per_lane * 4 * 2)  # f32, double-buffered
    cap = max(128, min(_MAX_TMO, (cap // 128) * 128))
    if mo <= cap:
        return mo, mo                                     # single full-width tile, no pad
    tmo = 0
    for cand in range(cap, 127, -128):                    # prefer a divisor -> no padding
        if mo % cand == 0:
            tmo = cand
            break
    if tmo == 0:
        tmo = cap
    mo_pad = pl.cdiv(mo, tmo) * tmo
    return tmo, mo_pad


@jax.jit
def factorized_reduce(x, w1, w2, gamma, beta):
    """x: (N, C_in, H, W) float32 NCHW.  Returns (N, C_out, H//2, W//2) NCHW."""
    N, C_in, H, W = x.shape
    C_half = w1.shape[0]
    C_out = 2 * C_half
    assert H % 2 == 0 and W % 2 == 0, "even spatial dims required so the two branches cat"
    Ho, Wo = H // 2, W // 2
    Mo = Ho * Wo

    x = x.astype(jnp.float32)
    # Stride-2 sampling grids of the two 1x1 convs, flattened so spatial sits in
    # the lane dim and C_in in the contraction dim (no N<->C transpose anywhere).
    # TODO(synk): fuse this stride-2 gather into the kernel; a minor-dim (lane)
    # stride-2 deinterleave has no clean/portable Pallas-TPU lowering, so x1/x2
    # are produced by one XLA strided-slice fusion (the pad below folds into it).
    x1 = x[:, :, 0::2, 0::2].reshape(N, C_in, Mo)
    x2 = x[:, :, 1::2, 1::2].reshape(N, C_in, Mo)

    tmo, mo_pad = _pick_tile(Mo, C_in, C_half)
    if mo_pad != Mo:
        # Zero padding: relu(0) = 0 so padded lanes contribute nothing to BN sums.
        pad = ((0, 0), (0, 0), (0, mo_pad - Mo))
        x1 = jnp.pad(x1, pad)
        x2 = jnp.pad(x2, pad)
    n_t = mo_pad // tmo
    grid = (N, n_t)

    w1m = w1.reshape(C_half, C_in).astype(jnp.float32)
    w2m = w2.reshape(C_half, C_in).astype(jnp.float32)

    x_spec = pl.BlockSpec((1, C_in, tmo), lambda n, t: (n, 0, t))
    w_spec = pl.BlockSpec((C_half, C_in), lambda n, t: (0, 0))
    h_spec = pl.BlockSpec((1, 2, C_half, tmo), lambda n, t: (n, 0, 0, t))
    stat_spec = pl.BlockSpec((1, 2, C_half, 1), lambda n, t: (n, 0, 0, 0))

    matmul_flops = 2 * 2 * N * mo_pad * C_in * C_half
    x_bytes = 2 * N * C_in * mo_pad * 4
    h_bytes = N * C_out * mo_pad * 4

    # ---- Pass A: conv + per-sample batch statistics (megacore-shardable over N).
    h, sums, sumsq = pl.pallas_call(
        _conv_stats_kernel,
        out_shape=(jax.ShapeDtypeStruct((N, 2, C_half, mo_pad), jnp.float32),
                   jax.ShapeDtypeStruct((N, 2, C_half, 1), jnp.float32),
                   jax.ShapeDtypeStruct((N, 2, C_half, 1), jnp.float32)),
        grid=grid,
        in_specs=[x_spec, x_spec, w_spec, w_spec],
        out_specs=(h_spec, stat_spec, stat_spec),
        compiler_params=pltpu.CompilerParams(
            dimension_semantics=("parallel", "arbitrary"),
            vmem_limit_bytes=_VMEM_LIMIT),
        cost_estimate=pl.CostEstimate(
            flops=matmul_flops, transcendentals=0,
            bytes_accessed=x_bytes + h_bytes + 2 * C_half * C_in * 4),
    )(x1, x2, w1m, w2m)

    # ---- Fold BN (training-mode batch stats, biased variance) into scale/shift.
    m_total = jnp.float32(N * Mo)
    total_sum = jnp.sum(sums, axis=0)        # (2, C_half, 1)
    total_sumsq = jnp.sum(sumsq, axis=0)
    mean = total_sum / m_total
    # TODO(synk): sumsq/m - mean^2 is cancellation-prone when |mean| >> std; a
    # centered/compensated accumulation would need an extra pass over the data.
    var = jnp.maximum(total_sumsq / m_total - mean * mean, 0.0)
    g2 = gamma.astype(jnp.float32).reshape(2, C_half, 1)
    b2 = beta.astype(jnp.float32).reshape(2, C_half, 1)
    scale = g2 * jax.lax.rsqrt(var + _EPS)
    shift = b2 - mean * scale

    # ---- Pass B: normalize h in place (fully parallel, pure scale+shift).
    vec_spec = pl.BlockSpec((2, C_half, 1), lambda n, t: (0, 0, 0))
    out = pl.pallas_call(
        _bn_kernel,
        out_shape=jax.ShapeDtypeStruct((N, 2, C_half, mo_pad), jnp.float32),
        grid=grid,
        in_specs=[h_spec, vec_spec, vec_spec],
        out_specs=h_spec,
        input_output_aliases={0: 0},           # normalize h's buffer in place
        compiler_params=pltpu.CompilerParams(
            dimension_semantics=("parallel", "parallel"),
            vmem_limit_bytes=_VMEM_LIMIT),
        cost_estimate=pl.CostEstimate(
            flops=2 * N * C_out * mo_pad, transcendentals=0,
            bytes_accessed=2 * h_bytes),
    )(h, scale, shift)

    if mo_pad != Mo:
        out = out[:, :, :, :Mo]
    # (N, 2, C_half, Mo) -> (N, C_out, Ho, Wo) is a contiguous (free) reshape.
    return out.reshape(N, C_out, Ho, Wo)


def _reference(x, w1, w2, gamma, beta):
    """Plain-JAX reference of the PyTorch forward (training-mode BN)."""
    xr = jnp.maximum(x, 0.0)
    x1 = xr[:, :, 0::2, 0::2]
    x2 = xr[:, :, 1::2, 1::2]
    w1m = w1.reshape(w1.shape[0], -1)
    w2m = w2.reshape(w2.shape[0], -1)
    h1 = jnp.einsum("nchw,oc->nohw", x1, w1m)
    h2 = jnp.einsum("nchw,oc->nohw", x2, w2m)
    h = jnp.concatenate([h1, h2], axis=1)
    mean = h.mean(axis=(0, 2, 3), keepdims=True)
    var = ((h - mean) ** 2).mean(axis=(0, 2, 3), keepdims=True)
    return (h - mean) * jax.lax.rsqrt(var + _EPS) * gamma.reshape(1, -1, 1, 1) + beta.reshape(
        1, -1, 1, 1
    )


if __name__ == "__main__":
    # Small deterministic example: N=2, C_in=4, C_out=4 (must be even), H=W=16.
    N, C_in, C_out, H, W = 2, 4, 4, 16, 16
    C_half = C_out // 2

    key = jax.random.PRNGKey(0)
    kx, k1, k2 = jax.random.split(key, 3)
    x = jax.random.normal(kx, (N, C_in, H, W), dtype=jnp.float32)
    # Conv2d weight shape in PyTorch: (C_out//2, C_in, 1, 1); deterministic init.
    w1 = jax.random.normal(k1, (C_half, C_in, 1, 1), dtype=jnp.float32) * 0.1
    w2 = jax.random.normal(k2, (C_half, C_in, 1, 1), dtype=jnp.float32) * 0.1
    # BatchNorm2d(affine=True) default init.
    gamma = jnp.ones((C_out,), dtype=jnp.float32)
    beta = jnp.zeros((C_out,), dtype=jnp.float32)

    out = factorized_reduce(x, w1, w2, gamma, beta)
    jax.block_until_ready(out)

    ref = _reference(x, w1, w2, gamma, beta)
    assert out.shape == (N, C_out, H // 2, W // 2)
    assert jnp.allclose(out, ref, atol=1e-4, rtol=1e-4)

    print("KERNEL_OK")
</pallas_src>

<mosaic_0001>
module attributes {stable_mosaic.version = 11 : i64} {
  func.func @_conv_stats_kernel(%arg0: i32, %arg1: i32, %arg2: memref<1x4x64xf32, #tpu.memory_space<vmem>>, %arg3: memref<1x4x64xf32, #tpu.memory_space<vmem>>, %arg4: memref<2x4xf32, #tpu.memory_space<vmem>>, %arg5: memref<2x4xf32, #tpu.memory_space<vmem>>, %arg6: memref<1x2x2x64xf32, #tpu.memory_space<vmem>>, %arg7: memref<1x2x2x1xf32, #tpu.memory_space<vmem>>, %arg8: memref<1x2x2x1xf32, #tpu.memory_space<vmem>>) attributes {dimension_semantics = [#tpu.dimension_semantics<parallel>, #tpu.dimension_semantics<arbitrary>], iteration_bounds = array<i64: 2, 1>, scalar_prefetch = 0 : i64, scratch_operands = 0 : i64, tpu.core_type = #tpu.core_type<tc>, window_params = [{transform_indices = @transform_0, window_bounds = array<i64: 1, 4, 64>}, {transform_indices = @transform_1, window_bounds = array<i64: 1, 4, 64>}, {pipeline_mode = #tpu.pipeline_mode<synchronous>, transform_indices = @transform_2, window_bounds = array<i64: 2, 4>}, {pipeline_mode = #tpu.pipeline_mode<synchronous>, transform_indices = @transform_3, window_bounds = array<i64: 2, 4>}, {transform_indices = @transform_4, window_bounds = array<i64: 1, 2, 2, 64>}, {transform_indices = @transform_5, window_bounds = array<i64: 1, 2, 2, 1>}, {transform_indices = @transform_6, window_bounds = array<i64: 1, 2, 2, 1>}]} {
    %c0_i32 = arith.constant 0 : i32
    %0 = arith.cmpi eq, %arg1, %c0_i32 : i32
    %1 = arith.extui %0 : i1 to i32
    %c0_i32_0 = arith.constant 0 : i32
    %2 = arith.cmpi ne, %1, %c0_i32_0 : i32
    scf.if %2 {
      %cst_56 = arith.constant 0.000000e+00 : f32
      %55 = vector.broadcast %cst_56 : f32 to vector<1x2x2x1xf32>
      %c0_57 = arith.constant 0 : index
      %c0_58 = arith.constant 0 : index
      %c0_59 = arith.constant 0 : index
      %c0_60 = arith.constant 0 : index
      %56 = vector.load %arg7[%c0_57, %c0_58, %c0_59, %c0_60] : memref<1x2x2x1xf32, #tpu.memory_space<vmem>>, vector<1x2x2x1xf32>
      tpu.vector_store %arg7[%c0_57, %c0_58, %c0_59, %c0_60], %55 {strides = array<i32>} : memref<1x2x2x1xf32, #tpu.memory_space<vmem>>, vector<1x2x2x1xf32>,
      %cst_61 = arith.constant 0.000000e+00 : f32
      %57 = vector.broadcast %cst_61 : f32 to vector<1x2x2x1xf32>
      %c0_62 = arith.constant 0 : index
      %c0_63 = arith.constant 0 : index
      %c0_64 = arith.constant 0 : index
      %c0_65 = arith.constant 0 : index
      %58 = vector.load %arg8[%c0_62, %c0_63, %c0_64, %c0_65] : memref<1x2x2x1xf32, #tpu.memory_space<vmem>>, vector<1x2x2x1xf32>
      tpu.vector_store %arg8[%c0_62, %c0_63, %c0_64, %c0_65], %57 {strides = array<i32>} : memref<1x2x2x1xf32, #tpu.memory_space<vmem>>, vector<1x2x2x1xf32>,
    } else {
    }
    %c0 = arith.constant 0 : index
    %c0_1 = arith.constant 0 : index
    %c0_2 = arith.constant 0 : index
    %3 = vector.load %arg2[%c0, %c0_1, %c0_2] : memref<1x4x64xf32, #tpu.memory_space<vmem>>, vector<1x4x64xf32>
    %4 = vector.shape_cast %3 : vector<1x4x64xf32> to vector<4x64xf32>
    %cst = arith.constant 0.000000e+00 : f32
    %5 = vector.broadcast %cst : f32 to vector<4x64xf32>
    %6 = arith.maximumf %4, %5 : vector<4x64xf32>
    %c0_3 = arith.constant 0 : index
    %c0_4 = arith.constant 0 : index
    %c0_5 = arith.constant 0 : index
    %7 = vector.load %arg3[%c0_3, %c0_4, %c0_5] : memref<1x4x64xf32, #tpu.memory_space<vmem>>, vector<1x4x64xf32>
    %8 = vector.shape_cast %7 : vector<1x4x64xf32> to vector<4x64xf32>
    %cst_6 = arith.constant 0.000000e+00 : f32
    %9 = vector.broadcast %cst_6 : f32 to vector<4x64xf32>
    %10 = arith.maximumf %8, %9 : vector<4x64xf32>
    %c0_7 = arith.constant 0 : index
    %c0_8 = arith.constant 0 : index
    %11 = vector.load %arg4[%c0_7, %c0_8] : memref<2x4xf32, #tpu.memory_space<vmem>>, vector<2x4xf32>
    %cst_9 = arith.constant dense<0.000000e+00> : vector<2x64xf32>
    %12 = tpu.matmul %11, %6, %cst_9 {dimension_numbers = #tpu.dot_dimension_numbers<[1], [0], [0], [1], [0, 0, 1, 1], [], []>} : vector<2x4xf32>, vector<4x64xf32>, vector<2x64xf32> -> vector<2x64xf32>
    %c0_10 = arith.constant 0 : index
    %c0_11 = arith.constant 0 : index
    %13 = vector.load %arg5[%c0_10, %c0_11] : memref<2x4xf32, #tpu.memory_space<vmem>>, vector<2x4xf32>
    %cst_12 = arith.constant dense<0.000000e+00> : vector<2x64xf32>
    %14 = tpu.matmul %13, %10, %cst_12 {dimension_numbers = #tpu.dot_dimension_numbers<[1], [0], [0], [1], [0, 0, 1, 1], [], []>} : vector<2x4xf32>, vector<4x64xf32>, vector<2x64xf32> -> vector<2x64xf32>
    %c0_13 = arith.constant 0 : index
    %c0_14 = arith.constant 0 : index
    %c0_15 = arith.constant 0 : index
    %c0_16 = arith.constant 0 : index
    %15 = vector.load %arg6[%c0_13, %c0_14, %c0_15, %c0_16] : memref<1x2x2x64xf32, #tpu.memory_space<vmem>>, vector<1x1x2x64xf32>
    %16 = vector.shape_cast %15 : vector<1x1x2x64xf32> to vector<2x64xf32>
    %17 = vector.shape_cast %12 : vector<2x64xf32> to vector<1x1x2x64xf32>
    tpu.vector_store %arg6[%c0_13, %c0_14, %c0_15, %c0_16], %17 {strides = array<i32>} : memref<1x2x2x64xf32, #tpu.memory_space<vmem>>, vector<1x1x2x64xf32>,
    %c0_17 = arith.constant 0 : index
    %c1 = arith.constant 1 : index
    %c0_18 = arith.constant 0 : index
    %c0_19 = arith.constant 0 : index
    %18 = vector.load %arg6[%c0_17, %c1, %c0_18, %c0_19] : memref<1x2x2x64xf32, #tpu.memory_space<vmem>>, vector<1x1x2x64xf32>
    %19 = vector.shape_cast %18 : vector<1x1x2x64xf32> to vector<2x64xf32>
    %20 = vector.shape_cast %14 : vector<2x64xf32> to vector<1x1x2x64xf32>
    tpu.vector_store %arg6[%c0_17, %c1, %c0_18, %c0_19], %20 {strides = array<i32>} : memref<1x2x2x64xf32, #tpu.memory_space<vmem>>, vector<1x1x2x64xf32>,
    %c0_20 = arith.constant 0 : index
    %c0_21 = arith.constant 0 : index
    %c0_22 = arith.constant 0 : index
    %c0_23 = arith.constant 0 : index
    %21 = vector.load %arg7[%c0_20, %c0_21, %c0_22, %c0_23] : memref<1x2x2x1xf32, #tpu.memory_space<vmem>>, vector<1x1x2x1xf32>
    %22 = vector.shape_cast %21 : vector<1x1x2x1xf32> to vector<2x1xf32>
    %cst_24 = arith.constant dense<0.000000e+00> : vector<2xf32>
    %23 = vector.multi_reduction <add>, %12, %cst_24 [1] : vector<2x64xf32> to vector<2xf32>
    %24 = vector.shape_cast %23 : vector<2xf32> to vector<2x1xf32>
    %25 = arith.addf %22, %24 : vector<2x1xf32>
    %c0_25 = arith.constant 0 : index
    %c0_26 = arith.constant 0 : index
    %c0_27 = arith.constant 0 : index
    %c0_28 = arith.constant 0 : index
    %26 = vector.load %arg7[%c0_25, %c0_26, %c0_27, %c0_28] : memref<1x2x2x1xf32, #tpu.memory_space<vmem>>, vector<1x1x2x1xf32>
    %27 = vector.shape_cast %26 : vector<1x1x2x1xf32> to vector<2x1xf32>
    %28 = vector.shape_cast %25 : vector<2x1xf32> to vector<1x1x2x1xf32>
    tpu.vector_store %arg7[%c0_25, %c0_26, %c0_27, %c0_28], %28 {strides = array<i32>} : memref<1x2x2x1xf32, #tpu.memory_space<vmem>>, vector<1x1x2x1xf32>,
    %c0_29 = arith.constant 0 : index
    %c1_30 = arith.constant 1 : index
    %c0_31 = arith.constant 0 : index
    %c0_32 = arith.constant 0 : index
    %29 = vector.load %arg7[%c0_29, %c1_30, %c0_31, %c0_32] : memref<1x2x2x1xf32, #tpu.memory_space<vmem>>, vector<1x1x2x1xf32>
    %30 = vector.shape_cast %29 : vector<1x1x2x1xf32> to vector<2x1xf32>
    %cst_33 = arith.constant dense<0.000000e+00> : vector<2xf32>
    %31 = vector.multi_reduction <add>, %14, %cst_33 [1] : vector<2x64xf32> to vector<2xf32>
    %32 = vector.shape_cast %31 : vector<2xf32> to vector<2x1xf32>
    %33 = arith.addf %30, %32 : vector<2x1xf32>
    %c0_34 = arith.constant 0 : index
    %c1_35 = arith.constant 1 : index
    %c0_36 = arith.constant 0 : index
    %c0_37 = arith.constant 0 : index
    %34 = vector.load %arg7[%c0_34, %c1_35, %c0_36, %c0_37] : memref<1x2x2x1xf32, #tpu.memory_space<vmem>>, vector<1x1x2x1xf32>
    %35 = vector.shape_cast %34 : vector<1x1x2x1xf32> to vector<2x1xf32>
    %36 = vector.shape_cast %33 : vector<2x1xf32> to vector<1x1x2x1xf32>
    tpu.vector_store %arg7[%c0_34, %c1_35, %c0_36, %c0_37], %36 {strides = array<i32>} : memref<1x2x2x1xf32, #tpu.memory_space<vmem>>, vector<1x1x2x1xf32>,
    %c0_38 = arith.constant 0 : index
    %c0_39 = arith.constant 0 : index
    %c0_40 = arith.constant 0 : index
    %c0_41 = arith.constant 0 : index
    %37 = vector.load %arg8[%c0_38, %c0_39, %c0_40, %c0_41] : memref<1x2x2x1xf32, #tpu.memory_space<vmem>>, vector<1x1x2x1xf32>
    %38 = vector.shape_cast %37 : vector<1x1x2x1xf32> to vector<2x1xf32>
    %39 = arith.mulf %12, %12 : vector<2x64xf32>
    %cst_42 = arith.constant dense<0.000000e+00> : vector<2xf32>
    %40 = vector.multi_reduction <add>, %39, %cst_42 [1] : vector<2x64xf32> to vector<2xf32>
    %41 = vector.shape_cast %40 : vector<2xf32> to vector<2x1xf32>
    %42 = arith.addf %38, %41 : vector<2x1xf32>
    %c0_43 = arith.constant 0 : index
    %c0_44 = arith.constant 0 : index
    %c0_45 = arith.constant 0 : index
    %c0_46 = arith.constant 0 : index
    %43 = vector.load %arg8[%c0_43, %c0_44, %c0_45, %c0_46] : memref<1x2x2x1xf32, #tpu.memory_space<vmem>>, vector<1x1x2x1xf32>
    %44 = vector.shape_cast %43 : vector<1x1x2x1xf32> to vector<2x1xf32>
    %45 = vector.shape_cast %42 : vector<2x1xf32> to vector<1x1x2x1xf32>
    tpu.vector_store %arg8[%c0_43, %c0_44, %c0_45, %c0_46], %45 {strides = array<i32>} : memref<1x2x2x1xf32, #tpu.memory_space<vmem>>, vector<1x1x2x1xf32>,
    %c0_47 = arith.constant 0 : index
    %c1_48 = arith.constant 1 : index
    %c0_49 = arith.constant 0 : index
    %c0_50 = arith.constant 0 : index
    %46 = vector.load %arg8[%c0_47, %c1_48, %c0_49, %c0_50] : memref<1x2x2x1xf32, #tpu.memory_space<vmem>>, vector<1x1x2x1xf32>
    %47 = vector.shape_cast %46 : vector<1x1x2x1xf32> to vector<2x1xf32>
    %48 = arith.mulf %14, %14 : vector<2x64xf32>
    %cst_51 = arith.constant dense<0.000000e+00> : vector<2xf32>
    %49 = vector.multi_reduction <add>, %48, %cst_51 [1] : vector<2x64xf32> to vector<2xf32>
    %50 = vector.shape_cast %49 : vector<2xf32> to vector<2x1xf32>
    %51 = arith.addf %47, %50 : vector<2x1xf32>
    %c0_52 = arith.constant 0 : index
    %c1_53 = arith.constant 1 : index
    %c0_54 = arith.constant 0 : index
    %c0_55 = arith.constant 0 : index
    %52 = vector.load %arg8[%c0_52, %c1_53, %c0_54, %c0_55] : memref<1x2x2x1xf32, #tpu.memory_space<vmem>>, vector<1x1x2x1xf32>
    %53 = vector.shape_cast %52 : vector<1x1x2x1xf32> to vector<2x1xf32>
    %54 = vector.shape_cast %51 : vector<2x1xf32> to vector<1x1x2x1xf32>
    tpu.vector_store %arg8[%c0_52, %c1_53, %c0_54, %c0_55], %54 {strides = array<i32>} : memref<1x2x2x1xf32, #tpu.memory_space<vmem>>, vector<1x1x2x1xf32>,
    return
  }
  func.func @transform_0(%arg0: i32, %arg1: i32) -> (i32, i32, i32) {
    %c0_i32 = arith.constant 0 : i32
    %c0_i32_0 = arith.constant 0 : i32
    return %arg0, %c0_i32, %arg1 : i32, i32, i32
  }
  func.func @transform_1(%arg0: i32, %arg1: i32) -> (i32, i32, i32) {
    %c0_i32 = arith.constant 0 : i32
    %c0_i32_0 = arith.constant 0 : i32
    return %arg0, %c0_i32, %arg1 : i32, i32, i32
  }
  func.func @transform_2(%arg0: i32, %arg1: i32) -> (i32, i32) {
    %c0_i32 = arith.constant 0 : i32
    %c0_i32_0 = arith.constant 0 : i32
    %c0_i32_1 = arith.constant 0 : i32
    return %c0_i32, %c0_i32_0 : i32, i32
  }
  func.func @transform_3(%arg0: i32, %arg1: i32) -> (i32, i32) {
    %c0_i32 = arith.constant 0 : i32
    %c0_i32_0 = arith.constant 0 : i32
    %c0_i32_1 = arith.constant 0 : i32
    return %c0_i32, %c0_i32_0 : i32, i32
  }
  func.func @transform_4(%arg0: i32, %arg1: i32) -> (i32, i32, i32, i32) {
    %c0_i32 = arith.constant 0 : i32
    %c0_i32_0 = arith.constant 0 : i32
    %c0_i32_1 = arith.constant 0 : i32
    return %arg0, %c0_i32, %c0_i32_0, %arg1 : i32, i32, i32, i32
  }
  func.func @transform_5(%arg0: i32, %arg1: i32) -> (i32, i32, i32, i32) {
    %c0_i32 = arith.constant 0 : i32
    %c0_i32_0 = arith.constant 0 : i32
    %c0_i32_1 = arith.constant 0 : i32
    %c0_i32_2 = arith.constant 0 : i32
    return %arg0, %c0_i32, %c0_i32_0, %c0_i32_1 : i32, i32, i32, i32
  }
  func.func @transform_6(%arg0: i32, %arg1: i32) -> (i32, i32, i32, i32) {
    %c0_i32 = arith.constant 0 : i32
    %c0_i32_0 = arith.constant 0 : i32
    %c0_i32_1 = arith.constant 0 : i32
    %c0_i32_2 = arith.constant 0 : i32
    return %arg0, %c0_i32, %c0_i32_0, %c0_i32_1 : i32, i32, i32, i32
  }
}

module attributes {stable_mosaic.version = 11 : i64} {
  func.func @_bn_kernel(%arg0: i32, %arg1: i32, %arg2: memref<1x2x2x64xf32, #tpu.memory_space<vmem>>, %arg3: memref<2x2x1xf32, #tpu.memory_space<vmem>>, %arg4: memref<2x2x1xf32, #tpu.memory_space<vmem>>, %arg5: memref<1x2x2x64xf32, #tpu.memory_space<vmem>>) attributes {dimension_semantics = [#tpu.dimension_semantics<parallel>, #tpu.dimension_semantics<parallel>], iteration_bounds = array<i64: 2, 1>, scalar_prefetch = 0 : i64, scratch_operands = 0 : i64, tpu.core_type = #tpu.core_type<tc>, window_params = [{transform_indices = @transform_0, window_bounds = array<i64: 1, 2, 2, 64>}, {pipeline_mode = #tpu.pipeline_mode<synchronous>, transform_indices = @transform_1, window_bounds = array<i64: 2, 2, 1>}, {pipeline_mode = #tpu.pipeline_mode<synchronous>, transform_indices = @transform_2, window_bounds = array<i64: 2, 2, 1>}, {transform_indices = @transform_3, window_bounds = array<i64: 1, 2, 2, 64>}]} {
    %c0 = arith.constant 0 : index
    %c0_0 = arith.constant 0 : index
    %c0_1 = arith.constant 0 : index
    %c0_2 = arith.constant 0 : index
    %0 = vector.load %arg2[%c0, %c0_0, %c0_1, %c0_2] : memref<1x2x2x64xf32, #tpu.memory_space<vmem>>, vector<1x1x2x64xf32>
    %1 = vector.shape_cast %0 : vector<1x1x2x64xf32> to vector<2x64xf32>
    %c0_3 = arith.constant 0 : index
    %c0_4 = arith.constant 0 : index
    %c0_5 = arith.constant 0 : index
    %2 = vector.load %arg3[%c0_3, %c0_4, %c0_5] : memref<2x2x1xf32, #tpu.memory_space<vmem>>, vector<1x2x1xf32>
    %3 = vector.shape_cast %2 : vector<1x2x1xf32> to vector<2x1xf32>
    %4 = vector.broadcast %3 : vector<2x1xf32> to vector<2x64xf32>
    %5 = arith.mulf %1, %4 : vector<2x64xf32>
    %c0_6 = arith.constant 0 : index
    %c0_7 = arith.constant 0 : index
    %c0_8 = arith.constant 0 : index
    %6 = vector.load %arg4[%c0_6, %c0_7, %c0_8] : memref<2x2x1xf32, #tpu.memory_space<vmem>>, vector<1x2x1xf32>
    %7 = vector.shape_cast %6 : vector<1x2x1xf32> to vector<2x1xf32>
    %8 = vector.broadcast %7 : vector<2x1xf32> to vector<2x64xf32>
    %9 = arith.addf %5, %8 : vector<2x64xf32>
    %c0_9 = arith.constant 0 : index
    %c0_10 = arith.constant 0 : index
    %c0_11 = arith.constant 0 : index
    %c0_12 = arith.constant 0 : index
    %10 = vector.load %arg5[%c0_9, %c0_10, %c0_11, %c0_12] : memref<1x2x2x64xf32, #tpu.memory_space<vmem>>, vector<1x1x2x64xf32>
    %11 = vector.shape_cast %10 : vector<1x1x2x64xf32> to vector<2x64xf32>
    %12 = vector.shape_cast %9 : vector<2x64xf32> to vector<1x1x2x64xf32>
    tpu.vector_store %arg5[%c0_9, %c0_10, %c0_11, %c0_12], %12 {strides = array<i32>} : memref<1x2x2x64xf32, #tpu.memory_space<vmem>>, vector<1x1x2x64xf32>,
    %c0_13 = arith.constant 0 : index
    %c1 = arith.constant 1 : index
    %c0_14 = arith.constant 0 : index
    %c0_15 = arith.constant 0 : index
    %13 = vector.load %arg2[%c0_13, %c1, %c0_14, %c0_15] : memref<1x2x2x64xf32, #tpu.memory_space<vmem>>, vector<1x1x2x64xf32>
    %14 = vector.shape_cast %13 : vector<1x1x2x64xf32> to vector<2x64xf32>
    %c1_16 = arith.constant 1 : index
    %c0_17 = arith.constant 0 : index
    %c0_18 = arith.constant 0 : index
    %15 = vector.load %arg3[%c1_16, %c0_17, %c0_18] : memref<2x2x1xf32, #tpu.memory_space<vmem>>, vector<1x2x1xf32>
    %16 = vector.shape_cast %15 : vector<1x2x1xf32> to vector<2x1xf32>
    %17 = vector.broadcast %16 : vector<2x1xf32> to vector<2x64xf32>
    %18 = arith.mulf %14, %17 : vector<2x64xf32>
    %c1_19 = arith.constant 1 : index
    %c0_20 = arith.constant 0 : index
    %c0_21 = arith.constant 0 : index
    %19 = vector.load %arg4[%c1_19, %c0_20, %c0_21] : memref<2x2x1xf32, #tpu.memory_space<vmem>>, vector<1x2x1xf32>
    %20 = vector.shape_cast %19 : vector<1x2x1xf32> to vector<2x1xf32>
    %21 = vector.broadcast %20 : vector<2x1xf32> to vector<2x64xf32>
    %22 = arith.addf %18, %21 : vector<2x64xf32>
    %c0_22 = arith.constant 0 : index
    %c1_23 = arith.constant 1 : index
    %c0_24 = arith.constant 0 : index
    %c0_25 = arith.constant 0 : index
    %23 = vector.load %arg5[%c0_22, %c1_23, %c0_24, %c0_25] : memref<1x2x2x64xf32, #tpu.memory_space<vmem>>, vector<1x1x2x64xf32>
    %24 = vector.shape_cast %23 : vector<1x1x2x64xf32> to vector<2x64xf32>
    %25 = vector.shape_cast %22 : vector<2x64xf32> to vector<1x1x2x64xf32>
    tpu.vector_store %arg5[%c0_22, %c1_23, %c0_24, %c0_25], %25 {strides = array<i32>} : memref<1x2x2x64xf32, #tpu.memory_space<vmem>>, vector<1x1x2x64xf32>,
    return
  }
  func.func @transform_0(%arg0: i32, %arg1: i32) -> (i32, i32, i32, i32) {
    %c0_i32 = arith.constant 0 : i32
    %c0_i32_0 = arith.constant 0 : i32
    %c0_i32_1 = arith.constant 0 : i32
    return %arg0, %c0_i32, %c0_i32_0, %arg1 : i32, i32, i32, i32
  }
  func.func @transform_1(%arg0: i32, %arg1: i32) -> (i32, i32, i32) {
    %c0_i32 = arith.constant 0 : i32
    %c0_i32_0 = arith.constant 0 : i32
    %c0_i32_1 = arith.constant 0 : i32
    %c0_i32_2 = arith.constant 0 : i32
    return %c0_i32, %c0_i32_0, %c0_i32_1 : i32, i32, i32
  }
  func.func @transform_2(%arg0: i32, %arg1: i32) -> (i32, i32, i32) {
    %c0_i32 = arith.constant 0 : i32
    %c0_i32_0 = arith.constant 0 : i32
    %c0_i32_1 = arith.constant 0 : i32
    %c0_i32_2 = arith.constant 0 : i32
    return %c0_i32, %c0_i32_0, %c0_i32_1 : i32, i32, i32
  }
  func.func @transform_3(%arg0: i32, %arg1: i32) -> (i32, i32, i32, i32) {
    %c0_i32 = arith.constant 0 : i32
    %c0_i32_0 = arith.constant 0 : i32
    %c0_i32_1 = arith.constant 0 : i32
    return %arg0, %c0_i32, %c0_i32_0, %arg1 : i32, i32, i32, i32
  }
}

</mosaic_0001>

<llo_original>
// kernel: factorized_reduce.3
$region0: #{factorized_reduce.3}
  #allocation0 [shape = 'u32[]', space=smem, size = 0x4, offset = 0x4, fixed_abs, tag = 'smem constant byte address 0x4 - core index']
  #allocation1 [shape = 'u32[144,128]{1,0:T(1,128)}', space=vmem, size = 0x12000, scoped, tag = 'internal scratch']
  %s0 = inlined_call_operand.vmem [shape: f32[2,2,2,64], index: 0, kind: input, shape index: {}, may-alias: {0,3}]
  %s1 = inlined_call_operand.vmem [shape: f32[2,2,1], index: 1, kind: input, shape index: {}]
  %s2 = inlined_call_operand.vmem [shape: f32[2,2,1], index: 2, kind: input, shape index: {}]
  %s3 = inlined_call_operand.vmem [shape: f32[2,2,2,64], index: 3, kind: output, shape index: {}, may-alias: {0,3}]
  %s4 = sld [smem:[#allocation0]]
  $region45: #{factorized_reduce.3} parent=0
    _
  %s6 = ssub.s32 1, %s4
  %s7 = scalar_select 0, %s6, %s4
  loop: start=0, step=1, limit=4
  $region2: #{factorized_reduce.3} parent=0 // loop_pre_header
    _
  $region3: #{factorized_reduce.3} parent=0 // loop_header
    %s9 = sphi 0, %s13
    %p10 = scmp.ge.s32.totalorder %s9, 4
    %s16 = sphi 0, %s28
    %s17 = sphi 0, %s24
    %s18 = sphi 0, %s16
    %s19 = sphi 0, %s17
    %s20 = sphi 0, %s18
    %s21 = sphi 0, %s19
    %s33 = sphi 0, %s35
    %s36 = sphi 0, %s33
    %s37 = sphi 0, %s36
    %s53 = sphi 0, %s37
    %s57 = sphi 0, %s57
    %s59 = sphi 0, %s57
    %s60 = sphi 0, %s59
    %s74 = sphi 0, %s60
    %s78 = sphi 0, %s78
    %s80 = sphi 0, %s78
    %s81 = sphi 0, %s80
    %s95 = sphi 0, %s81
    %s103 = sphi 0, %s105
    %s106 = sphi 0, %s103
    %s107 = sphi 0, %s106
    %s123 = sphi 0, %s107
  $region4: #{factorized_reduce.3} parent=0 // loop_header_branch
    %12 = sbr.rel (%p10) target = $region8
  $region5: #{factorized_reduce.3} parent=0 // loop_body
    %s14 = ssub.s32 %s9, 1
    %s15 = ssub.s32 %s9, 2
    %s22 = sadd.s32 1, %s17
    %p23 = scmp.ge.s32.totalorder %s22, 1
    %s24 = scalar_select %p23, 0, %s22
    %s25 = sadd.s32 1, %s16
    %s26 = scalar_select %p23, %s25, %s16
    %p27 = scmp.ge.s32.totalorder %s26, 2
    %s28 = scalar_select %p27, 0, %s26
    %s29 = ssub.s32 %s16, %s28
    %s30 = ssub.s32 %s17, %s24
    %s31 = sor.u32 %s29, %s30
    %p32 = scmp.eq.s32.totalorder %s31, 0
    %s34 = sadd.s32 %s33, 1
    %s35 = scalar_select %p32, %s33, %s34
    %p38 = pneg %p32
    %p39 = scmp.eq.s32.totalorder %s9, 1
    %p40 = por %p38, %p39
    %p41 = scmp.ne.s32.totalorder %s33, %s36
    %p42 = scmp.eq.s32.totalorder %s9, 0
    %p43 = por %p41, %p42
    %p44 = scmp.ne.s32.totalorder %s33, %s36
    %p45 = scmp.eq.s32.totalorder %s14, 1
    %p46 = por %p44, %p45
    %p47 = scmp.ne.s32.totalorder %s36, %s37
    %p48 = scmp.eq.s32.totalorder %s14, 0
    %p49 = por %p47, %p48
    %p50 = scmp.ne.s32.totalorder %s36, %s37
    %p51 = scmp.eq.s32.totalorder %s15, 1
    %p52 = por %p50, %p51
    %p54 = scmp.ne.s32.totalorder %s37, %s53
    %p55 = scmp.eq.s32.totalorder %s15, 0
    %p56 = por %p54, %p55
    %s58 = sadd.s32 %s57, 1
    %p61 = scmp.eq.s32.totalorder %s9, 1
    %p62 = scmp.ne.s32.totalorder %s57, %s59
    %p63 = scmp.eq.s32.totalorder %s9, 0
    %p64 = por %p62, %p63
    %p65 = scmp.ne.s32.totalorder %s57, %s59
    %p66 = scmp.eq.s32.totalorder %s14, 1
    %p67 = por %p65, %p66
    %p68 = scmp.ne.s32.totalorder %s59, %s60
    %p69 = scmp.eq.s32.totalorder %s14, 0
    %p70 = por %p68, %p69
    %p71 = scmp.ne.s32.totalorder %s59, %s60
    %p72 = scmp.eq.s32.totalorder %s15, 1
    %p73 = por %p71, %p72
    %p75 = scmp.ne.s32.totalorder %s60, %s74
    %p76 = scmp.eq.s32.totalorder %s15, 0
    %p77 = por %p75, %p76
    %s79 = sadd.s32 %s78, 1
    %p82 = scmp.eq.s32.totalorder %s9, 1
    %p83 = scmp.ne.s32.totalorder %s78, %s80
    %p84 = scmp.eq.s32.totalorder %s9, 0
    %p85 = por %p83, %p84
    %p86 = scmp.ne.s32.totalorder %s78, %s80
    %p87 = scmp.eq.s32.totalorder %s14, 1
    %p88 = por %p86, %p87
    %p89 = scmp.ne.s32.totalorder %s80, %s81
    %p90 = scmp.eq.s32.totalorder %s14, 0
    %p91 = por %p89, %p90
    %p92 = scmp.ne.s32.totalorder %s80, %s81
    %p93 = scmp.eq.s32.totalorder %s15, 1
    %p94 = por %p92, %p93
    %p96 = scmp.ne.s32.totalorder %s81, %s95
    %p97 = scmp.eq.s32.totalorder %s15, 0
    %p98 = por %p96, %p97
    %s99 = ssub.s32 %s16, %s28
    %s100 = ssub.s32 %s17, %s24
    %s101 = sor.u32 %s99, %s100
    %p102 = scmp.eq.s32.totalorder %s101, 0
    %s104 = sadd.s32 %s103, 1
    %s105 = scalar_select %p102, %s103, %s104
    %p108 = pneg %p102
    %p109 = scmp.eq.s32.totalorder %s9, 1
    %p110 = por %p108, %p109
    %p111 = scmp.ne.s32.totalorder %s103, %s106
    %p112 = scmp.eq.s32.totalorder %s9, 0
    %p113 = por %p111, %p112
    %p114 = scmp.ne.s32.totalorder %s103, %s106
    %p115 = scmp.eq.s32.totalorder %s14, 1
    %p116 = por %p114, %p115
    %p117 = scmp.ne.s32.totalorder %s106, %s107
    %p118 = scmp.eq.s32.totalorder %s14, 0
    %p119 = por %p117, %p118
    %p120 = scmp.ne.s32.totalorder %s106, %s107
    %p121 = scmp.eq.s32.totalorder %s15, 1
    %p122 = por %p120, %p121
    %p124 = scmp.ne.s32.totalorder %s107, %s123
    %p125 = scmp.eq.s32.totalorder %s15, 0
    %p126 = por %p124, %p125
    %p127 = scmp.le.s32.totalorder 1, %s9
    %p128 = scmp.lt.s32.totalorder %s9, 3
    %p129 = pnand %p127, %p128
    %p130 = pneg %p129
    // Predicated region
    $region9: #{factorized_reduce.3} parent=5 // pred_check
      _
    $region10: #{factorized_reduce.3} parent=5 // pred_check_branch
      %132 = sbr.rel (%p129) target = $region12
    $region11: #{factorized_reduce.3} parent=5 // pred_region
      %s133 = ssub.s32 %s9, 1
      // Predicated region
      $region13: #{factorized_reduce.3} parent=11 // pred_check
        %p134 = pneg %p70
      $region14: #{factorized_reduce.3} parent=11 // pred_check_branch
        %136 = sbr.rel (%p134) target = $region16
      $region15: #{factorized_reduce.3} parent=11 // pred_region
        _
      $region16: #{factorized_reduce.3} parent=11 // pred_fallthru
        _
      // Predicated region
      $region17: #{factorized_reduce.3} parent=11 // pred_check
        %p137 = pneg %p91
      $region18: #{factorized_reduce.3} parent=11 // pred_check_branch
        %139 = sbr.rel (%p137) target = $region20
      $region19: #{factorized_reduce.3} parent=11 // pred_region
        _
      $region20: #{factorized_reduce.3} parent=11 // pred_fallthru
        _
    $region12: #{factorized_reduce.3} parent=5 // pred_fallthru
      _
    %p140 = scmp.lt.s32.totalorder %s9, 2
    // Predicated region
    $region21: #{factorized_reduce.3} parent=5 // pred_check
      %p141 = pneg %p140
    $region22: #{factorized_reduce.3} parent=5 // pred_check_branch
      %143 = sbr.rel (%p141) target = $region24
    $region23: #{factorized_reduce.3} parent=5 // pred_region
      // Predicated region
      $region25: #{factorized_reduce.3} parent=23 // pred_check
        %p144 = pneg %p43
      $region26: #{factorized_reduce.3} parent=23 // pred_check_branch
        %146 = sbr.rel (%p144) target = $region28
      $region27: #{factorized_reduce.3} parent=23 // pred_region
        %p147 = scmp.lt.s32.totalorder %s16, 1
        %s148 = scalar_select %p147, %s16, 1
        %p149 = scmp.lt.s32.totalorder %s17, 0
        %s150 = scalar_select %p149, %s17, 0
        %s151 = smul.addr %s148, 2
        %s152 = sadd.s32 %s150, %s151
        %s153 = smul.addr %s152, 2
        %s154 = scalar_lea.vmem %s0, %s153
      $region28: #{factorized_reduce.3} parent=23 // pred_fallthru
        _
    $region24: #{factorized_reduce.3} parent=5 // pred_fallthru
      _
    %p155 = scmp.le.s32.totalorder 1, %s9
    %p156 = scmp.lt.s32.totalorder %s9, 3
    %p157 = pnand %p155, %p156
    %p158 = pneg %p157
    // Predicated region
    $region29: #{factorized_reduce.3} parent=5 // pred_check
      _
    $region30: #{factorized_reduce.3} parent=5 // pred_check_branch
      %160 = sbr.rel (%p157) target = $region32
    $region31: #{factorized_reduce.3} parent=5 // pred_region
      %s161 = ssub.s32 %s9, 1
      %p162 = scmp.lt.s32.totalorder %s18, 1
      %s163 = scalar_select %p162, %s18, 1
      %p164 = scmp.lt.s32.totalorder %s19, 0
      %s165 = scalar_select %p164, %s19, 0
      %s166 = smul.addr %s163, 2
      %s167 = sadd.s32 %s165, %s166
      %s168 = smul.addr %s167, 2
      %s169 = scalar_lea.vmem %s0, %s168
      %p170 = pneg %p49
      %p171 = pneg %p46
      %p172 = pneg %p70
      %p173 = pneg %p67
      %p174 = pneg %p91
      %p175 = pneg %p88
      %p176 = pneg %p119
      %p177 = pneg %p116
      %p178 = scmp.lt.s32.totalorder %s18, 1
      %s179 = scalar_select %p178, %s18, 1
      %p180 = scmp.lt.s32.totalorder %s19, 0
      %s181 = scalar_select %p180, %s19, 0
      %s182 = smul.addr %s179, 2
      %s183 = sadd.s32 %s181, %s182
      %s184 = smul.addr %s183, 2
      %s185 = scalar_lea.vmem %s3, %s184
      %p186 = scmp.lt.s32.totalorder %s18, 1
      %s187 = scalar_select %p186, %s18, 1
      %p188 = scmp.lt.s32.totalorder %s19, 0
      %s189 = scalar_select %p188, %s19, 0
      %s190 = smul.addr %s187, 2
      %s191 = sadd.s32 %s189, %s190
      %s192 = smul.addr %s191, 2
      %s193 = scalar_lea.vmem %s0, %s192
      %p194 = scmp.lt.s32.totalorder %s18, 1
      %s195 = scalar_select %p194, %s18, 1
      %p196 = scmp.lt.s32.totalorder %s19, 0
      %s197 = scalar_select %p196, %s19, 0
      %s198 = smul.addr %s195, 2
      %s199 = sadd.s32 %s197, %s198
      %s200 = smul.addr %s199, 2
      %s201 = scalar_lea.vmem %s3, %s200
      %v202 = vld [vmem:[%s193] sm:$0x3]
      %v203 = vld [vmem:[%s1] sm:$0x3]
      %205 = vset.pattern.permute.xlu0 0
      %206 = vperm.xlu0 %205, %v203
      %v207 = vpop.permute.xlu0 %206
      %v209 = vmul.f32 %v202, %v207
      %v210 = vld [vmem:[%s2] sm:$0x3]
      %212 = vset.pattern.permute.xlu0 0
      %213 = vperm.xlu0 %212, %v210
      %v214 = vpop.permute.xlu0 %213
      %v216 = vadd.f32 %v209, %v214
      %vm217 = vcmask 517120
      %218 = vst.msk [vmem:[%s201] sm:$0x3] %vm217, %v216
      %s219 = scalar_lea.vmem %s193, 2
      %v220 = vld [vmem:[%s219] sm:$0x3]
      %s221 = scalar_lea.vmem %s1, 2
      %v222 = vld [vmem:[%s221] sm:$0x3]
      %224 = vset.pattern.permute.xlu0 0
      %225 = vperm.xlu0 %224, %v222
      %v226 = vpop.permute.xlu0 %225
      %v228 = vmul.f32 %v220, %v226
      %s229 = scalar_lea.vmem %s2, 2
      %v230 = vld [vmem:[%s229] sm:$0x3]
      %232 = vset.pattern.permute.xlu0 0
      %233 = vperm.xlu0 %232, %v230
      %v234 = vpop.permute.xlu0 %233
      %v236 = vadd.f32 %v228, %v234
      %s237 = scalar_lea.vmem %s201, 2
      %238 = vst.msk [vmem:[%s237] sm:$0x3] %vm217, %v236
      %p239 = scmp.lt.s32.totalorder %s18, 1
      %s240 = scalar_select %p239, %s18, 1
      %p241 = scmp.lt.s32.totalorder %s19, 0
      %s242 = scalar_select %p241, %s19, 0
      %s243 = smul.addr %s240, 2
      %s244 = sadd.s32 %s242, %s243
      %s245 = smul.addr %s244, 2
      %s246 = scalar_lea.vmem %s3, %s245
      // Predicated region
      $region33: #{factorized_reduce.3} parent=31 // pred_check
        %p247 = pneg %p116
      $region34: #{factorized_reduce.3} parent=31 // pred_check_branch
        %249 = sbr.rel (%p247) target = $region36
      $region35: #{factorized_reduce.3} parent=31 // pred_region
        _
      $region36: #{factorized_reduce.3} parent=31 // pred_fallthru
        _
    $region32: #{factorized_reduce.3} parent=5 // pred_fallthru
      _
    %p250 = scmp.le.s32.totalorder 2, %s9
    // Predicated region
    $region37: #{factorized_reduce.3} parent=5 // pred_check
      %p251 = pneg %p250
    $region38: #{factorized_reduce.3} parent=5 // pred_check_branch
      %253 = sbr.rel (%p251) target = $region40
    $region39: #{factorized_reduce.3} parent=5 // pred_region
      %s254 = ssub.s32 %s9, 2
      // Predicated region
      $region41: #{factorized_reduce.3} parent=39 // pred_check
        %p255 = pneg %p122
      $region42: #{factorized_reduce.3} parent=39 // pred_check_branch
        %257 = sbr.rel (%p255) target = $region44
      $region43: #{factorized_reduce.3} parent=39 // pred_region
        %p258 = scmp.lt.s32.totalorder %s20, 1
        %s259 = scalar_select %p258, %s20, 1
        %p260 = scmp.lt.s32.totalorder %s21, 0
        %s261 = scalar_select %p260, %s21, 0
        %s262 = smul.addr %s259, 2
        %s263 = sadd.s32 %s261, %s262
        %s264 = smul.addr %s263, 2
        %s265 = scalar_lea.vmem %s3, %s264
      $region44: #{factorized_reduce.3} parent=39 // pred_fallthru
        _
    $region40: #{factorized_reduce.3} parent=5 // pred_fallthru
      _
  $region6: #{factorized_reduce.3} parent=0 // loop_footer
    %s13 = sadd.s32 1, %s9
  $region7: #{factorized_reduce.3} parent=0 // loop_footer_branch
    %8 = sbr.rel target = $region3
  $region8: #{factorized_reduce.3} parent=0 // loop_exit
    _

// kernel: factorized_reduce.2
$region0: #{factorized_reduce.2}
  #allocation0 [shape = 'u32[]', space=smem, size = 0x4, offset = 0x4, fixed_abs, tag = 'smem constant byte address 0x4 - core index']
  #allocation1 [shape = 'u32[144,128]{1,0:T(1,128)}', space=vmem, size = 0x12000, scoped, tag = 'internal scratch']
  %s0 = inlined_call_operand.vmem [shape: f32[2,4,64], index: 0, kind: input, shape index: {}]
  %s1 = inlined_call_operand.vmem [shape: f32[2,4,64], index: 1, kind: input, shape index: {}]
  %s2 = inlined_call_operand.vmem [shape: f32[2,4], index: 2, kind: input, shape index: {}]
  %s3 = inlined_call_operand.vmem [shape: f32[2,4], index: 3, kind: input, shape index: {}]
  %s4 = inlined_call_operand.vmem [shape: f32[2,2,2,64], index: 4, kind: output, shape index: {0}]
  %s5 = inlined_call_operand.vmem [shape: f32[2,2,2,1], index: 5, kind: output, shape index: {1}]
  %s6 = inlined_call_operand.vmem [shape: f32[2,2,2,1], index: 6, kind: output, shape index: {2}]
  %7 = xla_tuple %s4, %s5, %s6
  %s8 = sld [smem:[#allocation0]]
  $region69: #{factorized_reduce.2} parent=0
    _
  %s10 = ssub.s32 1, %s8
  %s11 = scalar_select 0, %s10, %s8
  loop: start=0, step=1, limit=4
  $region2: #{factorized_reduce.2} parent=0 // loop_pre_header
    _
  $region3: #{factorized_reduce.2} parent=0 // loop_header
    %s13 = sphi 0, %s17
    %p14 = scmp.ge.s32.totalorder %s13, 4
    %s20 = sphi 0, %s32
    %s21 = sphi 0, %s28
    %s22 = sphi 0, %s20
    %s23 = sphi 0, %s21
    %s24 = sphi 0, %s22
    %s25 = sphi 0, %s23
    %s37 = sphi 0, %s39
    %s40 = sphi 0, %s37
    %s41 = sphi 0, %s40
    %s57 = sphi 0, %s41
    %s65 = sphi 0, %s67
    %s68 = sphi 0, %s65
    %s69 = sphi 0, %s68
    %s85 = sphi 0, %s69
    %s89 = sphi 0, %s89
    %s91 = sphi 0, %s89
    %s92 = sphi 0, %s91
    %s106 = sphi 0, %s92
    %s110 = sphi 0, %s110
    %s112 = sphi 0, %s110
    %s113 = sphi 0, %s112
    %s127 = sphi 0, %s113
    %s135 = sphi 0, %s137
    %s138 = sphi 0, %s135
    %s139 = sphi 0, %s138
    %s155 = sphi 0, %s139
    %s161 = sphi 0, %s163
    %s164 = sphi 0, %s161
    %s165 = sphi 0, %s164
    %s181 = sphi 0, %s165
    %s187 = sphi 0, %s189
    %s190 = sphi 0, %s187
    %s191 = sphi 0, %s190
    %s207 = sphi 0, %s191
  $region4: #{factorized_reduce.2} parent=0 // loop_header_branch
    %16 = sbr.rel (%p14) target = $region8
  $region5: #{factorized_reduce.2} parent=0 // loop_body
    %s18 = ssub.s32 %s13, 1
    %s19 = ssub.s32 %s13, 2
    %s26 = sadd.s32 1, %s21
    %p27 = scmp.ge.s32.totalorder %s26, 1
    %s28 = scalar_select %p27, 0, %s26
    %s29 = sadd.s32 1, %s20
    %s30 = scalar_select %p27, %s29, %s20
    %p31 = scmp.ge.s32.totalorder %s30, 2
    %s32 = scalar_select %p31, 0, %s30
    %s33 = ssub.s32 %s20, %s32
    %s34 = ssub.s32 %s21, %s28
    %s35 = sor.u32 %s33, %s34
    %p36 = scmp.eq.s32.totalorder %s35, 0
    %s38 = sadd.s32 %s37, 1
    %s39 = scalar_select %p36, %s37, %s38
    %p42 = pneg %p36
    %p43 = scmp.eq.s32.totalorder %s13, 1
    %p44 = por %p42, %p43
    %p45 = scmp.ne.s32.totalorder %s37, %s40
    %p46 = scmp.eq.s32.totalorder %s13, 0
    %p47 = por %p45, %p46
    %p48 = scmp.ne.s32.totalorder %s37, %s40
    %p49 = scmp.eq.s32.totalorder %s18, 1
    %p50 = por %p48, %p49
    %p51 = scmp.ne.s32.totalorder %s40, %s41
    %p52 = scmp.eq.s32.totalorder %s18, 0
    %p53 = por %p51, %p52
    %p54 = scmp.ne.s32.totalorder %s40, %s41
    %p55 = scmp.eq.s32.totalorder %s19, 1
    %p56 = por %p54, %p55
    %p58 = scmp.ne.s32.totalorder %s41, %s57
    %p59 = scmp.eq.s32.totalorder %s19, 0
    %p60 = por %p58, %p59
    %s61 = ssub.s32 %s20, %s32
    %s62 = ssub.s32 %s21, %s28
    %s63 = sor.u32 %s61, %s62
    %p64 = scmp.eq.s32.totalorder %s63, 0
    %s66 = sadd.s32 %s65, 1
    %s67 = scalar_select %p64, %s65, %s66
    %p70 = pneg %p64
    %p71 = scmp.eq.s32.totalorder %s13, 1
    %p72 = por %p70, %p71
    %p73 = scmp.ne.s32.totalorder %s65, %s68
    %p74 = scmp.eq.s32.totalorder %s13, 0
    %p75 = por %p73, %p74
    %p76 = scmp.ne.s32.totalorder %s65, %s68
    %p77 = scmp.eq.s32.totalorder %s18, 1
    %p78 = por %p76, %p77
    %p79 = scmp.ne.s32.totalorder %s68, %s69
    %p80 = scmp.eq.s32.totalorder %s18, 0
    %p81 = por %p79, %p80
    %p82 = scmp.ne.s32.totalorder %s68, %s69
    %p83 = scmp.eq.s32.totalorder %s19, 1
    %p84 = por %p82, %p83
    %p86 = scmp.ne.s32.totalorder %s69, %s85
    %p87 = scmp.eq.s32.totalorder %s19, 0
    %p88 = por %p86, %p87
    %s90 = sadd.s32 %s89, 1
    %p93 = scmp.eq.s32.totalorder %s13, 1
    %p94 = scmp.ne.s32.totalorder %s89, %s91
    %p95 = scmp.eq.s32.totalorder %s13, 0
    %p96 = por %p94, %p95
    %p97 = scmp.ne.s32.totalorder %s89, %s91
    %p98 = scmp.eq.s32.totalorder %s18, 1
    %p99 = por %p97, %p98
    %p100 = scmp.ne.s32.totalorder %s91, %s92
    %p101 = scmp.eq.s32.totalorder %s18, 0
    %p102 = por %p100, %p101
    %p103 = scmp.ne.s32.totalorder %s91, %s92
    %p104 = scmp.eq.s32.totalorder %s19, 1
    %p105 = por %p103, %p104
    %p107 = scmp.ne.s32.totalorder %s92, %s106
    %p108 = scmp.eq.s32.totalorder %s19, 0
    %p109 = por %p107, %p108
    %s111 = sadd.s32 %s110, 1
    %p114 = scmp.eq.s32.totalorder %s13, 1
    %p115 = scmp.ne.s32.totalorder %s110, %s112
    %p116 = scmp.eq.s32.totalorder %s13, 0
    %p117 = por %p115, %p116
    %p118 = scmp.ne.s32.totalorder %s110, %s112
    %p119 = scmp.eq.s32.totalorder %s18, 1
    %p120 = por %p118, %p119
    %p121 = scmp.ne.s32.totalorder %s112, %s113
    %p122 = scmp.eq.s32.totalorder %s18, 0
    %p123 = por %p121, %p122
    %p124 = scmp.ne.s32.totalorder %s112, %s113
    %p125 = scmp.eq.s32.totalorder %s19, 1
    %p126 = por %p124, %p125
    %p128 = scmp.ne.s32.totalorder %s113, %s127
    %p129 = scmp.eq.s32.totalorder %s19, 0
    %p130 = por %p128, %p129
    %s131 = ssub.s32 %s20, %s32
    %s132 = ssub.s32 %s21, %s28
    %s133 = sor.u32 %s131, %s132
    %p134 = scmp.eq.s32.totalorder %s133, 0
    %s136 = sadd.s32 %s135, 1
    %s137 = scalar_select %p134, %s135, %s136
    %p140 = pneg %p134
    %p141 = scmp.eq.s32.totalorder %s13, 1
    %p142 = por %p140, %p141
    %p143 = scmp.ne.s32.totalorder %s135, %s138
    %p144 = scmp.eq.s32.totalorder %s13, 0
    %p145 = por %p143, %p144
    %p146 = scmp.ne.s32.totalorder %s135, %s138
    %p147 = scmp.eq.s32.totalorder %s18, 1
    %p148 = por %p146, %p147
    %p149 = scmp.ne.s32.totalorder %s138, %s139
    %p150 = scmp.eq.s32.totalorder %s18, 0
    %p151 = por %p149, %p150
    %p152 = scmp.ne.s32.totalorder %s138, %s139
    %p153 = scmp.eq.s32.totalorder %s19, 1
    %p154 = por %p152, %p153
    %p156 = scmp.ne.s32.totalorder %s139, %s155
    %p157 = scmp.eq.s32.totalorder %s19, 0
    %p158 = por %p156, %p157
    %s159 = ssub.s32 %s20, %s32
    %p160 = scmp.eq.s32.totalorder %s159, 0
    %s162 = sadd.s32 %s161, 1
    %s163 = scalar_select %p160, %s161, %s162
    %p166 = pneg %p160
    %p167 = scmp.eq.s32.totalorder %s13, 1
    %p168 = por %p166, %p167
    %p169 = scmp.ne.s32.totalorder %s161, %s164
    %p170 = scmp.eq.s32.totalorder %s13, 0
    %p171 = por %p169, %p170
    %p172 = scmp.ne.s32.totalorder %s161, %s164
    %p173 = scmp.eq.s32.totalorder %s18, 1
    %p174 = por %p172, %p173
    %p175 = scmp.ne.s32.totalorder %s164, %s165
    %p176 = scmp.eq.s32.totalorder %s18, 0
    %p177 = por %p175, %p176
    %p178 = scmp.ne.s32.totalorder %s164, %s165
    %p179 = scmp.eq.s32.totalorder %s19, 1
    %p180 = por %p178, %p179
    %p182 = scmp.ne.s32.totalorder %s165, %s181
    %p183 = scmp.eq.s32.totalorder %s19, 0
    %p184 = por %p182, %p183
    %s185 = ssub.s32 %s20, %s32
    %p186 = scmp.eq.s32.totalorder %s185, 0
    %s188 = sadd.s32 %s187, 1
    %s189 = scalar_select %p186, %s187, %s188
    %p192 = pneg %p186
    %p193 = scmp.eq.s32.totalorder %s13, 1
    %p194 = por %p192, %p193
    %p195 = scmp.ne.s32.totalorder %s187, %s190
    %p196 = scmp.eq.s32.totalorder %s13, 0
    %p197 = por %p195, %p196
    %p198 = scmp.ne.s32.totalorder %s187, %s190
    %p199 = scmp.eq.s32.totalorder %s18, 1
    %p200 = por %p198, %p199
    %p201 = scmp.ne.s32.totalorder %s190, %s191
    %p202 = scmp.eq.s32.totalorder %s18, 0
    %p203 = por %p201, %p202
    %p204 = scmp.ne.s32.totalorder %s190, %s191
    %p205 = scmp.eq.s32.totalorder %s19, 1
    %p206 = por %p204, %p205
    %p208 = scmp.ne.s32.totalorder %s191, %s207
    %p209 = scmp.eq.s32.totalorder %s19, 0
    %p210 = por %p208, %p209
    %p211 = scmp.le.s32.totalorder 1, %s13
    %p212 = scmp.lt.s32.totalorder %s13, 3
    %p213 = pnand %p211, %p212
    %p214 = pneg %p213
    // Predicated region
    $region9: #{factorized_reduce.2} parent=5 // pred_check
      _
    $region10: #{factorized_reduce.2} parent=5 // pred_check_branch
      %216 = sbr.rel (%p213) target = $region12
    $region11: #{factorized_reduce.2} parent=5 // pred_region
      %s217 = ssub.s32 %s13, 1
      // Predicated region
      $region13: #{factorized_reduce.2} parent=11 // pred_check
        %p218 = pneg %p102
      $region14: #{factorized_reduce.2} parent=11 // pred_check_branch
        %220 = sbr.rel (%p218) target = $region16
      $region15: #{factorized_reduce.2} parent=11 // pred_region
        _
      $region16: #{factorized_reduce.2} parent=11 // pred_fallthru
        _
      // Predicated region
      $region17: #{factorized_reduce.2} parent=11 // pred_check
        %p221 = pneg %p123
      $region18: #{factorized_reduce.2} parent=11 // pred_check_branch
        %223 = sbr.rel (%p221) target = $region20
      $region19: #{factorized_reduce.2} parent=11 // pred_region
        _
      $region20: #{factorized_reduce.2} parent=11 // pred_fallthru
        _
    $region12: #{factorized_reduce.2} parent=5 // pred_fallthru
      _
    %p224 = scmp.lt.s32.totalorder %s13, 2
    // Predicated region
    $region21: #{factorized_reduce.2} parent=5 // pred_check
      %p225 = pneg %p224
    $region22: #{factorized_reduce.2} parent=5 // pred_check_branch
      %227 = sbr.rel (%p225) target = $region24
    $region23: #{factorized_reduce.2} parent=5 // pred_region
      // Predicated region
      $region25: #{factorized_reduce.2} parent=23 // pred_check
        %p228 = pneg %p47
      $region26: #{factorized_reduce.2} parent=23 // pred_check_branch
        %230 = sbr.rel (%p228) target = $region28
      $region27: #{factorized_reduce.2} parent=23 // pred_region
        %p231 = scmp.lt.s32.totalorder %s20, 1
        %s232 = scalar_select %p231, %s20, 1
        %p233 = scmp.lt.s32.totalorder %s21, 0
        %s234 = scalar_select %p233, %s21, 0
        %s235 = sadd.s32 %s234, %s232
        %s236 = smul.addr %s235, 4
        %s237 = scalar_lea.vmem %s0, %s236
      $region28: #{factorized_reduce.2} parent=23 // pred_fallthru
        _
      // Predicated region
      $region29: #{factorized_reduce.2} parent=23 // pred_check
        %p238 = pneg %p75
      $region30: #{factorized_reduce.2} parent=23 // pred_check_branch
        %240 = sbr.rel (%p238) target = $region32
      $region31: #{factorized_reduce.2} parent=23 // pred_region
        %p241 = scmp.lt.s32.totalorder %s20, 1
        %s242 = scalar_select %p241, %s20, 1
        %p243 = scmp.lt.s32.totalorder %s21, 0
        %s244 = scalar_select %p243, %s21, 0
        %s245 = sadd.s32 %s244, %s242
        %s246 = smul.addr %s245, 4
        %s247 = scalar_lea.vmem %s1, %s246
      $region32: #{factorized_reduce.2} parent=23 // pred_fallthru
        _
    $region24: #{factorized_reduce.2} parent=5 // pred_fallthru
      _
    %p248 = scmp.le.s32.totalorder 1, %s13
    %p249 = scmp.lt.s32.totalorder %s13, 3
    %p250 = pnand %p248, %p249
    %p251 = pneg %p250
    // Predicated region
    $region33: #{factorized_reduce.2} parent=5 // pred_check
      _
    $region34: #{factorized_reduce.2} parent=5 // pred_check_branch
      %253 = sbr.rel (%p250) target = $region36
    $region35: #{factorized_reduce.2} parent=5 // pred_region
      %s254 = ssub.s32 %s13, 1
      %p255 = scmp.lt.s32.totalorder %s22, 1
      %s256 = scalar_select %p255, %s22, 1
      %p257 = scmp.lt.s32.totalorder %s23, 0
      %s258 = scalar_select %p257, %s23, 0
      %s259 = sadd.s32 %s258, %s256
      %s260 = smul.addr %s259, 4
      %s261 = scalar_lea.vmem %s0, %s260
      %p262 = pneg %p53
      %p263 = pneg %p50
      %p264 = scmp.lt.s32.totalorder %s22, 1
      %s265 = scalar_select %p264, %s22, 1
      %p266 = scmp.lt.s32.totalorder %s23, 0
      %s267 = scalar_select %p266, %s23, 0
      %s268 = sadd.s32 %s267, %s265
      %s269 = smul.addr %s268, 4
      %s270 = scalar_lea.vmem %s1, %s269
      %p271 = pneg %p81
      %p272 = pneg %p78
      %p273 = pneg %p102
      %p274 = pneg %p99
      %p275 = pneg %p123
      %p276 = pneg %p120
      %p277 = pneg %p151
      %p278 = pneg %p148
      %p279 = scmp.lt.s32.totalorder %s22, 1
      %s280 = scalar_select %p279, %s22, 1
      %p281 = scmp.lt.s32.totalorder %s23, 0
      %s282 = scalar_select %p281, %s23, 0
      %s283 = smul.addr %s280, 2
      %s284 = sadd.s32 %s282, %s283
      %s285 = smul.addr %s284, 2
      %s286 = scalar_lea.vmem %s4, %s285
      %p287 = pneg %p177
      %p288 = pneg %p174
      %p289 = scmp.lt.s32.totalorder %s22, 1
      %s290 = scalar_select %p289, %s22, 1
      %s291 = smul.addr %s290, 2
      %s292 = smul.addr %s291, 2
      %s293 = scalar_lea.vmem %s5, %s292
      %p294 = pneg %p203
      %p295 = pneg %p200
      %p296 = scmp.lt.s32.totalorder %s22, 1
      %s297 = scalar_select %p296, %s22, 1
      %s298 = smul.addr %s297, 2
      %s299 = smul.addr %s298, 2
      %s300 = scalar_lea.vmem %s6, %s299
      %p301 = scmp.lt.s32.totalorder %s22, 1
      %s302 = scalar_select %p301, %s22, 1
      %p303 = scmp.lt.s32.totalorder %s23, 0
      %s304 = scalar_select %p303, %s23, 0
      %s305 = sadd.s32 %s304, %s302
      %s306 = smul.addr %s305, 4
      %s307 = scalar_lea.vmem %s0, %s306
      %p308 = scmp.lt.s32.totalorder %s22, 1
      %s309 = scalar_select %p308, %s22, 1
      %p310 = scmp.lt.s32.totalorder %s23, 0
      %s311 = scalar_select %p310, %s23, 0
      %s312 = sadd.s32 %s311, %s309
      %s313 = smul.addr %s312, 4
      %s314 = scalar_lea.vmem %s1, %s313
      %p315 = scmp.lt.s32.totalorder %s22, 1
      %s316 = scalar_select %p315, %s22, 1
      %p317 = scmp.lt.s32.totalorder %s23, 0
      %s318 = scalar_select %p317, %s23, 0
      %s319 = smul.addr %s316, 2
      %s320 = sadd.s32 %s318, %s319
      %s321 = smul.addr %s320, 2
      %s322 = scalar_lea.vmem %s4, %s321
      %p323 = scmp.lt.s32.totalorder %s22, 1
      %s324 = scalar_select %p323, %s22, 1
      %s325 = smul.addr %s324, 2
      %s326 = smul.addr %s325, 2
      %s327 = scalar_lea.vmem %s5, %s326
      %p328 = scmp.lt.s32.totalorder %s22, 1
      %s329 = scalar_select %p328, %s22, 1
      %s330 = smul.addr %s329, 2
      %s331 = smul.addr %s330, 2
      %s332 = scalar_lea.vmem %s6, %s331
      %p333 = scmp.eq.s32.totalorder %s23, 0
      // Predicated region
      $region37: #{factorized_reduce.2} parent=35 // pred_check
        %p334 = pneg %p333
      $region38: #{factorized_reduce.2} parent=35 // pred_check_branch
        %336 = sbr.rel (%p334) target = $region40
      $region39: #{factorized_reduce.2} parent=35 // pred_region
        %vm337 = vcmask 1024
        %338 = vst.msk [vmem:[%s327] sm:$0x3] %vm337, 0.0
        %339 = vst.msk [vmem:[%s327 + $0x2] sm:$0x3] %vm337, 0.0
        %340 = vst.msk [vmem:[%s332] sm:$0x3] %vm337, 0.0
        %341 = vst.msk [vmem:[%s332 + $0x2] sm:$0x3] %vm337, 0.0
      $region40: #{factorized_reduce.2} parent=35 // pred_fallthru
        _
      %v342 = vld [vmem:[%s307] sm:$0xf]
      %v343 = vmax.f32 %v342, 0.0
      %v344 = vld [vmem:[%s314] sm:$0xf]
      %v345 = vmax.f32 %v344, 0.0
      %v346 = vld [vmem:[%s2] sm:$0x3]
      %vm347 = vcmask 31744
      %v349 = vsel %vm347, %v346, 0
      %vm351 = vcmask 1043456
      %v353 = vsel %vm351, %v343, 0
      %355 = vmatprep.subr.mxu0 0.0
      %356 = vmatpush1.msra.mxu0 %v353
      %357 = vmatprep.subr.mxu0 0.0
      %358 = vmatpush1.msra.mxu0 0.0
      %359 = vmatprep.subr.mxu0 0.0
      %360 = vmatpush1.msra.mxu0 0.0
      %361 = vmatprep.subr.mxu0 0.0
      %362 = vmatpush1.msra.mxu0 0.0
      %363 = vmatprep.subr.mxu0 0.0
      %364 = vmatpush1.msra.mxu0 0.0
      %365 = vmatprep.subr.mxu0 0.0
      %366 = vmatpush1.msra.mxu0 0.0
      %367 = vmatprep.subr.mxu0 0.0
      %368 = vmatpush1.msra.mxu0 0.0
      %369 = vmatprep.subr.mxu0 0.0
      %370 = vmatpush1.msra.mxu0 0.0
      %371 = vmatprep.subr.mxu0 0.0
      %372 = vmatpush1.msra.mxu0 0.0
      %373 = vmatprep.subr.mxu0 0.0
      %374 = vmatpush1.msra.mxu0 0.0
      %375 = vmatprep.subr.mxu0 0.0
      %376 = vmatpush1.msra.mxu0 0.0
      %377 = vmatprep.subr.mxu0 0.0
      %378 = vmatpush1.msra.mxu0 0.0
      %379 = vmatprep.subr.mxu0 0.0
      %380 = vmatpush1.msra.mxu0 0.0
      %381 = vmatprep.subr.mxu0 0.0
      %382 = vmatpush1.msra.mxu0 0.0
      %383 = vmatprep.subr.mxu0 0.0
      %384 = vmatpush1.msra.mxu0 0.0
      %385 = vmatprep.subr.mxu0 0.0
      %386 = vmatpush1.msra.mxu0 0.0
      %387 = vmatprep.subr.mxu0 0.0
      %388 = vmatpush1.msra.mxu0 0.0
      %389 = vmatprep.subr.mxu0 0.0
      %390 = vmatpush1.msra.mxu0 0.0
      %391 = vmatprep.subr.mxu0 0.0
      %392 = vmatpush1.msra.mxu0 0.0
      %393 = vmatprep.subr.mxu0 0.0
      %394 = vmatpush1.msra.mxu0 0.0
      %395 = vmatprep.subr.mxu0 0.0
      %396 = vmatpush1.msra.mxu0 0.0
      %397 = vmatprep.subr.mxu0 0.0
      %398 = vmatpush1.msra.mxu0 0.0
      %399 = vmatprep.subr.mxu0 0.0
      %400 = vmatpush1.msra.mxu0 0.0
      %401 = vmatprep.subr.mxu0 0.0
      %402 = vmatpush1.msra.mxu0 0.0
      %403 = vmatprep.subr.mxu0 0.0
      %404 = vmatpush1.msra.mxu0 0.0
      %405 = vmatprep.subr.mxu0 0.0
      %406 = vmatpush1.msra.mxu0 0.0
      %407 = vmatprep.subr.mxu0 0.0
      %408 = vmatpush1.msra.mxu0 0.0
      %409 = vmatprep.subr.mxu0 0.0
      %410 = vmatpush1.msra.mxu0 0.0
      %411 = vmatprep.subr.mxu0 0.0
      %412 = vmatpush1.msra.mxu0 0.0
      %413 = vmatprep.subr.mxu0 0.0
      %414 = vmatpush1.msra.mxu0 0.0
      %415 = vmatprep.subr.mxu0 0.0
      %416 = vmatpush1.msra.mxu0 0.0
      %417 = vmatprep.subr.mxu0 0.0
      %418 = vmatpush1.msra.mxu0 0.0
      %419 = vmatprep.mubr.f32.mxu0 0.0
      %420 = vmatmul.mubr.f32.gmra.mrb[0].mxu0 %v349
      %v421 = vpop.f32.mrb[0].mxu0
      %v422 = vadd.f32 0.0, %v421
      %v423 = vpop.f32.mrb[0].mxu0
      %424 = vdwg.mxu0
      %v425 = vld [vmem:[%s3] sm:$0x3]
      %v427 = vsel %vm347, %v425, 0
      %v430 = vsel %vm351, %v345, 0
      %432 = vmatprep.subr.mxu0 0.0
      %433 = vmatpush1.msra.mxu0 %v430
      %434 = vmatprep.subr.mxu0 0.0
      %435 = vmatpush1.msra.mxu0 0.0
      %436 = vmatprep.subr.mxu0 0.0
      %437 = vmatpush1.msra.mxu0 0.0
      %438 = vmatprep.subr.mxu0 0.0
      %439 = vmatpush1.msra.mxu0 0.0
      %440 = vmatprep.subr.mxu0 0.0
      %441 = vmatpush1.msra.mxu0 0.0
      %442 = vmatprep.subr.mxu0 0.0
      %443 = vmatpush1.msra.mxu0 0.0
      %444 = vmatprep.subr.mxu0 0.0
      %445 = vmatpush1.msra.mxu0 0.0
      %446 = vmatprep.subr.mxu0 0.0
      %447 = vmatpush1.msra.mxu0 0.0
      %448 = vmatprep.subr.mxu0 0.0
      %449 = vmatpush1.msra.mxu0 0.0
      %450 = vmatprep.subr.mxu0 0.0
      %451 = vmatpush1.msra.mxu0 0.0
      %452 = vmatprep.subr.mxu0 0.0
      %453 = vmatpush1.msra.mxu0 0.0
      %454 = vmatprep.subr.mxu0 0.0
      %455 = vmatpush1.msra.mxu0 0.0
      %456 = vmatprep.subr.mxu0 0.0
      %457 = vmatpush1.msra.mxu0 0.0
      %458 = vmatprep.subr.mxu0 0.0
      %459 = vmatpush1.msra.mxu0 0.0
      %460 = vmatprep.subr.mxu0 0.0
      %461 = vmatpush1.msra.mxu0 0.0
      %462 = vmatprep.subr.mxu0 0.0
      %463 = vmatpush1.msra.mxu0 0.0
      %464 = vmatprep.subr.mxu0 0.0
      %465 = vmatpush1.msra.mxu0 0.0
      %466 = vmatprep.subr.mxu0 0.0
      %467 = vmatpush1.msra.mxu0 0.0
      %468 = vmatprep.subr.mxu0 0.0
      %469 = vmatpush1.msra.mxu0 0.0
      %470 = vmatprep.subr.mxu0 0.0
      %471 = vmatpush1.msra.mxu0 0.0
      %472 = vmatprep.subr.mxu0 0.0
      %473 = vmatpush1.msra.mxu0 0.0
      %474 = vmatprep.subr.mxu0 0.0
      %475 = vmatpush1.msra.mxu0 0.0
      %476 = vmatprep.subr.mxu0 0.0
      %477 = vmatpush1.msra.mxu0 0.0
      %478 = vmatprep.subr.mxu0 0.0
      %479 = vmatpush1.msra.mxu0 0.0
      %480 = vmatprep.subr.mxu0 0.0
      %481 = vmatpush1.msra.mxu0 0.0
      %482 = vmatprep.subr.mxu0 0.0
      %483 = vmatpush1.msra.mxu0 0.0
      %484 = vmatprep.subr.mxu0 0.0
      %485 = vmatpush1.msra.mxu0 0.0
      %486 = vmatprep.subr.mxu0 0.0
      %487 = vmatpush1.msra.mxu0 0.0
      %488 = vmatprep.subr.mxu0 0.0
      %489 = vmatpush1.msra.mxu0 0.0
      %490 = vmatprep.subr.mxu0 0.0
      %491 = vmatpush1.msra.mxu0 0.0
      %492 = vmatprep.subr.mxu0 0.0
      %493 = vmatpush1.msra.mxu0 0.0
      %494 = vmatprep.subr.mxu0 0.0
      %495 = vmatpush1.msra.mxu0 0.0
      %496 = vmatprep.mubr.f32.mxu0 0.0
      %497 = vmatmul.mubr.f32.gmra.mrb[0].mxu0 %v427
      %v498 = vpop.f32.mrb[0].mxu0
      %v499 = vadd.f32 0.0, %v498
      %v500 = vpop.f32.mrb[0].mxu0
      %501 = vdwg.mxu0
      %vm502 = vcmask 517120
      %503 = vst.msk [vmem:[%s322] sm:$0x3] %vm502, %v422
      %s504 = scalar_lea.vmem %s322, 2
      %505 = vst.msk [vmem:[%s504] sm:$0x3] %vm502, %v499
      %v506 = vld [vmem:[%s327] sm:$0x3]
      %v507 = vsel %vm502, %v422, 0.0
      %508 = vadd.xlane.f32.xlu0 %v507
      %v509 = vpop.xlane.xlu0 %508
      %v510 = vadd.f32 %v506, %v509
      %vm511 = vcmask 1024
      %512 = vst.msk [vmem:[%s327] sm:$0x3] %vm511, %v510
      %s513 = scalar_lea.vmem %s327, 2
      %v514 = vld [vmem:[%s513] sm:$0x3]
      %v515 = vsel %vm502, %v499, 0.0
      %516 = vadd.xlane.f32.xlu0 %v515
      %v517 = vpop.xlane.xlu0 %516
      %v518 = vadd.f32 %v514, %v517
      %519 = vst.msk [vmem:[%s513] sm:$0x3] %vm511, %v518
      %v520 = vld [vmem:[%s332] sm:$0x3]
      %v521 = vmul.f32 %v422, %v422
      %v522 = vsel %vm502, %v521, 0.0
      %523 = vadd.xlane.f32.xlu0 %v522
      %v524 = vpop.xlane.xlu0 %523
      %v525 = vadd.f32 %v520, %v524
      %526 = vst.msk [vmem:[%s332] sm:$0x3] %vm511, %v525
      %s527 = scalar_lea.vmem %s332, 2
      %v528 = vld [vmem:[%s527] sm:$0x3]
      %v529 = vmul.f32 %v499, %v499
      %v530 = vsel %vm502, %v529, 0.0
      %531 = vadd.xlane.f32.xlu0 %v530
      %v532 = vpop.xlane.xlu0 %531
      %v533 = vadd.f32 %v528, %v532
      %534 = vst.msk [vmem:[%s527] sm:$0x3] %vm511, %v533
      %p535 = scmp.lt.s32.totalorder %s22, 1
      %s536 = scalar_select %p535, %s22, 1
      %p537 = scmp.lt.s32.totalorder %s23, 0
      %s538 = scalar_select %p537, %s23, 0
      %s539 = smul.addr %s536, 2
      %s540 = sadd.s32 %s538, %s539
      %s541 = smul.addr %s540, 2
      %s542 = scalar_lea.vmem %s4, %s541
      %p543 = scmp.lt.s32.totalorder %s22, 1
      %s544 = scalar_select %p543, %s22, 1
      %s545 = smul.addr %s544, 2
      %s546 = smul.addr %s545, 2
      %s547 = scalar_lea.vmem %s5, %s546
      %p548 = scmp.lt.s32.totalorder %s22, 1
      %s549 = scalar_select %p548, %s22, 1
      %s550 = smul.addr %s549, 2
      %s551 = smul.addr %s550, 2
      %s552 = scalar_lea.vmem %s6, %s551
      // Predicated region
      $region41: #{factorized_reduce.2} parent=35 // pred_check
        %p553 = pneg %p148
      $region42: #{factorized_reduce.2} parent=35 // pred_check_branch
        %555 = sbr.rel (%p553) target = $region44
      $region43: #{factorized_reduce.2} parent=35 // pred_region
        _
      $region44: #{factorized_reduce.2} parent=35 // pred_fallthru
        _
      // Predicated region
      $region45: #{factorized_reduce.2} parent=35 // pred_check
        %p556 = pneg %p174
      $region46: #{factorized_reduce.2} parent=35 // pred_check_branch
        %558 = sbr.rel (%p556) target = $region48
      $region47: #{factorized_reduce.2} parent=35 // pred_region
        _
      $region48: #{factorized_reduce.2} parent=35 // pred_fallthru
        _
      // Predicated region
      $region49: #{factorized_reduce.2} parent=35 // pred_check
        %p559 = pneg %p200
      $region50: #{factorized_reduce.2} parent=35 // pred_check_branch
        %561 = sbr.rel (%p559) target = $region52
      $region51: #{factorized_reduce.2} parent=35 // pred_region
        _
      $region52: #{factorized_reduce.2} parent=35 // pred_fallthru
        _
    $region36: #{factorized_reduce.2} parent=5 // pred_fallthru
      _
    %p562 = scmp.le.s32.totalorder 2, %s13
    // Predicated region
    $region53: #{factorized_reduce.2} parent=5 // pred_check
      %p563 = pneg %p562
    $region54: #{factorized_reduce.2} parent=5 // pred_check_branch
      %565 = sbr.rel (%p563) target = $region56
    $region55: #{factorized_reduce.2} parent=5 // pred_region
      %s566 = ssub.s32 %s13, 2
      // Predicated region
      $region57: #{factorized_reduce.2} parent=55 // pred_check
        %p567 = pneg %p154
      $region58: #{factorized_reduce.2} parent=55 // pred_check_branch
        %569 = sbr.rel (%p567) target = $region60
      $region59: #{factorized_reduce.2} parent=55 // pred_region
        %p570 = scmp.lt.s32.totalorder %s24, 1
        %s571 = scalar_select %p570, %s24, 1
        %p572 = scmp.lt.s32.totalorder %s25, 0
        %s573 = scalar_select %p572, %s25, 0
        %s574 = smul.addr %s571, 2
        %s575 = sadd.s32 %s573, %s574
        %s576 = smul.addr %s575, 2
        %s577 = scalar_lea.vmem %s4, %s576
      $region60: #{factorized_reduce.2} parent=55 // pred_fallthru
        _
      // Predicated region
      $region61: #{factorized_reduce.2} parent=55 // pred_check
        %p578 = pneg %p180
      $region62: #{factorized_reduce.2} parent=55 // pred_check_branch
        %580 = sbr.rel (%p578) target = $region64
      $region63: #{factorized_reduce.2} parent=55 // pred_region
        %p581 = scmp.lt.s32.totalorder %s24, 1
        %s582 = scalar_select %p581, %s24, 1
        %s583 = smul.addr %s582, 2
        %s584 = smul.addr %s583, 2
        %s585 = scalar_lea.vmem %s5, %s584
      $region64: #{factorized_reduce.2} parent=55 // pred_fallthru
        _
      // Predicated region
      $region65: #{factorized_reduce.2} parent=55 // pred_check
        %p586 = pneg %p206
      $region66: #{factorized_reduce.2} parent=55 // pred_check_branch
        %588 = sbr.rel (%p586) target = $region68
      $region67: #{factorized_reduce.2} parent=55 // pred_region
        %p589 = scmp.lt.s32.totalorder %s24, 1
        %s590 = scalar_select %p589, %s24, 1
        %s591 = smul.addr %s590, 2
        %s592 = smul.addr %s591, 2
        %s593 = scalar_lea.vmem %s6, %s592
      $region68: #{factorized_reduce.2} parent=55 // pred_fallthru
        _
    $region56: #{factorized_reduce.2} parent=5 // pred_fallthru
      _
  $region6: #{factorized_reduce.2} parent=0 // loop_footer
    %s17 = sadd.s32 1, %s13
  $region7: #{factorized_reduce.2} parent=0 // loop_footer_branch
    %12 = sbr.rel target = $region3
  $region8: #{factorized_reduce.2} parent=0 // loop_exit
    _

</llo_original>
